<compile_context>
chip_gen: v5e
topology: v5e:2x2
jax: 0.10.0
libtpu: 0.0.40
codegen_flags: <defaults>
</compile_context>

<pallas_src>
import functools

import jax
import jax.numpy as jnp
from jax.experimental import pallas as pl
from jax.experimental.pallas import tpu as pltpu

LANE = 128            # lane width
MAX_TILE_M = 2048     # rows per block: (2048, 128) f32 = 1 MiB / input / buffer
NUM_PARALLEL = 2      # leading 'parallel' axis (both TCs on v7x; harmless on v5e/v6e)


def _bce_kernel(x_ref, t_ref, out_ref, acc_ref, *,
                pos_weight, n_elems, steps, tile_m, need_mask):
    p = pl.program_id(0)
    i = pl.program_id(1)

    @pl.when(i == 0)
    def _():
        acc_ref[...] = jnp.zeros_like(acc_ref)

    # upcast in-kernel so bf16 inputs only cost half the HBM bytes
    x = x_ref[...].astype(jnp.float32)
    t = t_ref[...].astype(jnp.float32)

    # softplus(z) = max(z, 0) + log1p(exp(-|z|)); shared transcendental for +/-z
    lse = jnp.log1p(jnp.exp(-jnp.abs(x)))
    sp_pos = jnp.maximum(x, 0.0) + lse        # softplus(x)  = -log(1 - sigmoid(x))
    sp_neg = jnp.maximum(-x, 0.0) + lse       # softplus(-x) = -log(sigmoid(x))

    bce = jnp.float32(pos_weight) * t * sp_neg + (1.0 - t) * sp_pos
    add = (t - jnp.float32(0.5)) ** 2 * jnp.float32(4.0)
    loss = bce * add

    if need_mask:
        # zero contributions from lane padding / partial / duplicated blocks
        blk = p * steps + i
        base = blk * (tile_m * LANE)
        row = jax.lax.broadcasted_iota(jnp.int32, (tile_m, LANE), 0)
        col = jax.lax.broadcasted_iota(jnp.int32, (tile_m, LANE), 1)
        gidx = base + row * LANE + col
        loss = jnp.where(gidx < n_elems, loss, jnp.float32(0.0))

    acc_ref[...] += loss   # pure elementwise VPU add in the hot loop

    @pl.when(i == pl.num_programs(1) - 1)
    def _():
        # fold (tile_m, 128) accumulator down to this p's (8, 128) output block
        partial = acc_ref[pl.ds(0, 8), :]
        for k in range(1, tile_m // 8):
            partial = partial + acc_ref[pl.ds(k * 8, 8), :]
        out_ref[...] = partial


def custom_bce_loss(inp, target, pos_weight=1.0):
    """Pallas equivalent of CustomBCELoss.forward. Returns a scalar f32."""
    assert inp.shape == target.shape
    n = int(inp.size)
    assert n > 0

    # flatten to a lane-dense (rows, 128) slab; metadata-only when n % 128 == 0
    xf = inp.reshape(-1)
    tf = target.reshape(-1)
    if n % LANE != 0:
        pad = LANE - n % LANE
        xf = jnp.pad(xf, (0, pad))
        tf = jnp.pad(tf, (0, pad))
    rows = xf.shape[0] // LANE
    x2 = xf.reshape(rows, LANE)
    t2 = tf.reshape(rows, LANE)

    tile_m = min(MAX_TILE_M, max(8, ((rows + 7) // 8) * 8))
    nblocks = pl.cdiv(rows, tile_m)
    num_p = min(NUM_PARALLEL, nblocks)
    steps = pl.cdiv(nblocks, num_p)

    # masking only needed if there is lane padding, a partial last block,
    # or duplicated (clamped) blocks from the parallel split
    need_mask = (n != rows * LANE) or (rows % tile_m != 0) or (nblocks % num_p != 0)

    def in_map(p, i):
        # clamp overflow (p, i) pairs onto the last block; their contribution
        # is zeroed by the in-kernel mask
        return (jnp.minimum(p * steps + i, nblocks - 1), 0)

    kernel = functools.partial(
        _bce_kernel, pos_weight=float(pos_weight), n_elems=n,
        steps=steps, tile_m=tile_m, need_mask=need_mask)

    partials = pl.pallas_call(
        kernel,
        out_shape=jax.ShapeDtypeStruct((num_p * 8, LANE), jnp.float32),
        grid_spec=pltpu.PrefetchScalarGridSpec(
            num_scalar_prefetch=0,
            grid=(num_p, steps),
            in_specs=[
                pl.BlockSpec((tile_m, LANE), in_map),
                pl.BlockSpec((tile_m, LANE), in_map),
            ],
            out_specs=pl.BlockSpec((8, LANE), lambda p, i: (p, 0)),
            scratch_shapes=[pltpu.VMEM((tile_m, LANE), jnp.float32)],
        ),
        compiler_params=pltpu.CompilerParams(
            dimension_semantics=("parallel", "arbitrary")),
    )(x2, t2)

    return jnp.sum(partials) / jnp.float32(n)


def _reference(inp, target, pos_weight=1.0):
    # mirrors the PyTorch module (the clamp is a no-op for these inputs)
    x = inp.astype(jnp.float32)
    t = target.astype(jnp.float32)
    eps = jnp.float32(1e-38)  # module's 1e-44 is a subnormal (FTZ'd on TPU)
    p = jnp.clip(jax.nn.sigmoid(x), eps, 1.0 - eps)
    bce = -(pos_weight * t * jnp.log(p) + (1.0 - t) * jnp.log(1.0 - p))
    add = (t - 0.5) ** 2 * 4.0
    return jnp.mean(bce * add)


if __name__ == "__main__":
    key = jax.random.PRNGKey(0)

    def check(shape, pos_weight, k):
        k1, k2 = jax.random.split(k)
        x = jax.random.normal(k1, shape, dtype=jnp.float32)
        t = jax.random.bernoulli(k2, 0.3, shape).astype(jnp.float32)
        got = jax.block_until_ready(custom_bce_loss(x, t, pos_weight=pos_weight))
        ref = jax.block_until_ready(_reference(x, t, pos_weight=pos_weight))
        assert jnp.isfinite(got), (shape, got)
        assert jnp.allclose(got, ref, rtol=1e-4, atol=1e-6), (shape, got, ref)

    ks = jax.random.split(key, 3)
    check((2, 4, 16, 16), 1.0, ks[0])      # aligned tiny case, single block
    check((3, 5, 9, 7), 2.0, ks[1])        # ragged (945 elems): lane-pad + mask path
    check((2, 20, 128, 128), 1.0, ks[2])   # multi-block: grid (2,2), partial + clamped blocks
    print("KERNEL_OK")
</pallas_src>

<mosaic_0001>
module attributes {stable_mosaic.version = 11 : i64} {
  func.func @_bce_kernel(%arg0: i32, %arg1: i32, %arg2: memref<16x128xf32, #tpu.memory_space<vmem>>, %arg3: memref<16x128xf32, #tpu.memory_space<vmem>>, %arg4: memref<8x128xf32, #tpu.memory_space<vmem>>, %arg5: memref<16x128xf32, #tpu.memory_space<vmem>>) attributes {dimension_semantics = [#tpu.dimension_semantics<parallel>, #tpu.dimension_semantics<arbitrary>], iteration_bounds = array<i64: 1, 1>, scalar_prefetch = 0 : i64, scratch_operands = 1 : i64, tpu.core_type = #tpu.core_type<tc>, window_params = [{transform_indices = @transform_0, window_bounds = array<i64: 16, 128>}, {transform_indices = @transform_1, window_bounds = array<i64: 16, 128>}, {transform_indices = @transform_2, window_bounds = array<i64: 8, 128>}]} {
    %c0_i32 = arith.constant 0 : i32
    %0 = arith.cmpi eq, %arg1, %c0_i32 : i32
    %1 = arith.extui %0 : i1 to i32
    %c0_i32_0 = arith.constant 0 : i32
    %2 = arith.cmpi ne, %1, %c0_i32_0 : i32
    scf.if %2 {
      %cst_17 = arith.constant 0.000000e+00 : f32
      %37 = vector.broadcast %cst_17 : f32 to vector<16x128xf32>
      %c0_18 = arith.constant 0 : index
      %c0_19 = arith.constant 0 : index
      %38 = vector.load %arg5[%c0_18, %c0_19] : memref<16x128xf32, #tpu.memory_space<vmem>>, vector<16x128xf32>
      tpu.vector_store %arg5[%c0_18, %c0_19], %37 {strides = array<i32>} : memref<16x128xf32, #tpu.memory_space<vmem>>, vector<16x128xf32>,
    } else {
    }
    %c0 = arith.constant 0 : index
    %c0_1 = arith.constant 0 : index
    %3 = vector.load %arg2[%c0, %c0_1] : memref<16x128xf32, #tpu.memory_space<vmem>>, vector<16x128xf32>
    %c0_2 = arith.constant 0 : index
    %c0_3 = arith.constant 0 : index
    %4 = vector.load %arg3[%c0_2, %c0_3] : memref<16x128xf32, #tpu.memory_space<vmem>>, vector<16x128xf32>
    %5 = math.absf %3 : vector<16x128xf32>
    %cst = arith.constant 0.000000e+00 : f32
    %6 = vector.broadcast %cst : f32 to vector<16x128xf32>
    %7 = arith.subf %6, %5 : vector<16x128xf32>
    %8 = math.exp %7 : vector<16x128xf32>
    %9 = math.log1p %8 : vector<16x128xf32>
    %cst_4 = arith.constant 0.000000e+00 : f32
    %10 = vector.broadcast %cst_4 : f32 to vector<16x128xf32>
    %11 = arith.maximumf %3, %10 : vector<16x128xf32>
    %12 = arith.addf %11, %9 : vector<16x128xf32>
    %cst_5 = arith.constant 0.000000e+00 : f32
    %13 = vector.broadcast %cst_5 : f32 to vector<16x128xf32>
    %14 = arith.subf %13, %3 : vector<16x128xf32>
    %cst_6 = arith.constant 0.000000e+00 : f32
    %15 = vector.broadcast %cst_6 : f32 to vector<16x128xf32>
    %16 = arith.maximumf %14, %15 : vector<16x128xf32>
    %17 = arith.addf %16, %9 : vector<16x128xf32>
    %cst_7 = arith.constant 1.000000e+00 : f32
    %18 = vector.broadcast %cst_7 : f32 to vector<16x128xf32>
    %19 = arith.mulf %18, %4 : vector<16x128xf32>
    %20 = arith.mulf %19, %17 : vector<16x128xf32>
    %cst_8 = arith.constant 1.000000e+00 : f32
    %21 = vector.broadcast %cst_8 : f32 to vector<16x128xf32>
    %22 = arith.subf %21, %4 : vector<16x128xf32>
    %23 = arith.mulf %22, %12 : vector<16x128xf32>
    %24 = arith.addf %20, %23 : vector<16x128xf32>
    %cst_9 = arith.constant 5.000000e-01 : f32
    %25 = vector.broadcast %cst_9 : f32 to vector<16x128xf32>
    %26 = arith.subf %4, %25 : vector<16x128xf32>
    %27 = arith.mulf %26, %26 : vector<16x128xf32>
    %cst_10 = arith.constant 4.000000e+00 : f32
    %28 = vector.broadcast %cst_10 : f32 to vector<16x128xf32>
    %29 = arith.mulf %27, %28 : vector<16x128xf32>
    %30 = arith.mulf %24, %29 : vector<16x128xf32>
    %c0_11 = arith.constant 0 : index
    %c0_12 = arith.constant 0 : index
    %31 = vector.load %arg5[%c0_11, %c0_12] : memref<16x128xf32, #tpu.memory_space<vmem>>, vector<16x128xf32>
    %32 = arith.addf %31, %30 : vector<16x128xf32>
    %c0_13 = arith.constant 0 : index
    %c0_14 = arith.constant 0 : index
    %33 = vector.load %arg5[%c0_13, %c0_14] : memref<16x128xf32, #tpu.memory_space<vmem>>, vector<16x128xf32>
    tpu.vector_store %arg5[%c0_13, %c0_14], %32 {strides = array<i32>} : memref<16x128xf32, #tpu.memory_space<vmem>>, vector<16x128xf32>,
    %c0_i32_15 = arith.constant 0 : i32
    %34 = arith.cmpi eq, %arg1, %c0_i32_15 : i32
    %35 = arith.extui %34 : i1 to i32
    %c0_i32_16 = arith.constant 0 : i32
    %36 = arith.cmpi ne, %35, %c0_i32_16 : i32
    scf.if %36 {
      %c0_17 = arith.constant 0 : index
      %c0_18 = arith.constant 0 : index
      %37 = vector.load %arg5[%c0_17, %c0_18] : memref<16x128xf32, #tpu.memory_space<vmem>>, vector<8x128xf32>
      %c8 = arith.constant 8 : index
      %c0_19 = arith.constant 0 : index
      %38 = vector.load %arg5[%c8, %c0_19] : memref<16x128xf32, #tpu.memory_space<vmem>>, vector<8x128xf32>
      %39 = arith.addf %37, %38 : vector<8x128xf32>
      %c0_20 = arith.constant 0 : index
      %c0_21 = arith.constant 0 : index
      %40 = vector.load %arg4[%c0_20, %c0_21] : memref<8x128xf32, #tpu.memory_space<vmem>>, vector<8x128xf32>
      tpu.vector_store %arg4[%c0_20, %c0_21], %39 {strides = array<i32>} : memref<8x128xf32, #tpu.memory_space<vmem>>, vector<8x128xf32>,
    } else {
    }
    return
  }
  func.func @transform_0(%arg0: i32, %arg1: i32) -> (i32, i32) {
    %c1_i32 = arith.constant 1 : i32
    %0 = arith.muli %arg0, %c1_i32 : i32
    %1 = arith.addi %0, %arg1 : i32
    %c0_i32 = arith.constant 0 : i32
    %2 = arith.minsi %1, %c0_i32 : i32
    %c0_i32_0 = arith.constant 0 : i32
    %c0_i32_1 = arith.constant 0 : i32
    return %2, %c0_i32_0 : i32, i32
  }
  func.func @transform_1(%arg0: i32, %arg1: i32) -> (i32, i32) {
    %c1_i32 = arith.constant 1 : i32
    %0 = arith.muli %arg0, %c1_i32 : i32
    %1 = arith.addi %0, %arg1 : i32
    %c0_i32 = arith.constant 0 : i32
    %2 = arith.minsi %1, %c0_i32 : i32
    %c0_i32_0 = arith.constant 0 : i32
    %c0_i32_1 = arith.constant 0 : i32
    return %2, %c0_i32_0 : i32, i32
  }
  func.func @transform_2(%arg0: i32, %arg1: i32) -> (i32, i32) {
    %c0_i32 = arith.constant 0 : i32
    %c0_i32_0 = arith.constant 0 : i32
    return %arg0, %c0_i32 : i32, i32
  }
}

</mosaic_0001>

<llo_original>
// kernel: tpu_custom_call.1
$region0: #{tpu_custom_call.1}
  #allocation0 [shape = 'u32[]', space=smem, size = 0x4, offset = 0x4, fixed_abs, tag = 'smem constant byte address 0x4 - core index']
  #allocation1 [shape = 'u32[72,128]{1,0:T(1,128)}', space=vmem, size = 0x9000, scoped, tag = 'internal scratch']
  #allocation2 [shape = 'f32[16,128]{1,0:T(8,128)}', space=vmem, size = 0x2000, scoped, tag = 'scratch operand']
  %s0 = inlined_call_operand.hbm [shape: f32[16,128], index: 0, kind: input, shape index: {}]
  %s1 = inlined_call_operand.hbm [shape: f32[16,128], index: 1, kind: input, shape index: {}]
  %s2 = inlined_call_operand.hbm [shape: f32[8,128], index: 2, kind: output, shape index: {}]
  %s3 = sld [smem:[#allocation0]]
  $region34: #{tpu_custom_call.1} parent=0
    _
  %s5 = ssub.s32 1, %s3
  %s6 = scalar_select 0, %s5, %s3
  $region1: #{tpu_custom_call.1} parent=0
    #allocation3 [shape = 'u8[8192]{0}', space=vmem, size = 0x2000, scoped, tag = 'input window, operand 0, single buffered']
    #allocation4 [shape = 's32[1]{0}', space=sflag, size = 0x4, scoped, tag = 'scoped memory for tpu_custom_call.1']
    #allocation5 [shape = 's32[1]{0}', space=sflag, size = 0x4, scoped, tag = 'scoped memory for tpu_custom_call.1']
    #allocation6 [shape = 'u8[8192]{0}', space=vmem, size = 0x2000, scoped, tag = 'input window, operand 1, single buffered']
    #allocation7 [shape = 's32[1]{0}', space=sflag, size = 0x4, scoped, tag = 'scoped memory for tpu_custom_call.1']
    #allocation8 [shape = 'u8[4096]{0}', space=vmem, size = 0x1000, scoped, tag = 'output window, operand 0, single buffered']
    %7 = vsyncpa [#allocation4], 0
    %8 = vsyncpa [#allocation7], 0
    %9 = vsyncpa [#allocation5], 0
    // Predicated region
    $region2: #{tpu_custom_call.1} parent=1 // pred_check
      _
    $region3: #{tpu_custom_call.1} parent=1 // pred_check_branch
      %11 = sbr.rel (0) target = $region5
    $region4: #{tpu_custom_call.1} parent=1 // pred_region
      %s12 = sadd.s32 0, 0
      %p13 = scmp.lt.s32.totalorder %s12, 0
      %s14 = scalar_select %p13, %s12, 0
      %s15 = smul.u32 2, %s14
      %17 = vsyncadd [#allocation4], 0
      %s18 = smul.addr %s15, 8
      %s19 = scalar_lea.hbm %s0, %s18
      %s20 = sshll.u32 %s19, 4
      %s21 = int_to_ptr.hbm [resolvable:$true] %s20
      %s22 = sshll.u32 [#allocation3], 4
      %s23 = int_to_ptr.vmem [resolvable:$true] %s22
      %28 = dma.hbm_to_vmem [thread:$0]  %s21, 256, %s23, [#allocation4], 128, 128, 8
    $region5: #{tpu_custom_call.1} parent=1 // pred_fallthru
      _
    // Predicated region
    $region6: #{tpu_custom_call.1} parent=1 // pred_check
      _
    $region7: #{tpu_custom_call.1} parent=1 // pred_check_branch
      %30 = sbr.rel (0) target = $region9
    $region8: #{tpu_custom_call.1} parent=1 // pred_region
      %s31 = sadd.s32 0, 0
      %p32 = scmp.lt.s32.totalorder %s31, 0
      %s33 = scalar_select %p32, %s31, 0
      %s34 = smul.u32 2, %s33
      %36 = vsyncadd [#allocation7], 0
      %s37 = smul.addr %s34, 8
      %s38 = scalar_lea.hbm %s1, %s37
      %s39 = sshll.u32 %s38, 4
      %s40 = int_to_ptr.hbm [resolvable:$true] %s39
      %s41 = sshll.u32 [#allocation6], 4
      %s42 = int_to_ptr.vmem [resolvable:$true] %s41
      %47 = dma.hbm_to_vmem [thread:$0]  %s40, 256, %s42, [#allocation7], 128, 128, 8
    $region9: #{tpu_custom_call.1} parent=1 // pred_fallthru
      _
    // Predicated region
    $region10: #{tpu_custom_call.1} parent=1 // pred_check
      _
    $region11: #{tpu_custom_call.1} parent=1 // pred_check_branch
      %49 = sbr.rel (0) target = $region13
    $region12: #{tpu_custom_call.1} parent=1 // pred_region
      %51 = dma.done [#allocation4], 256
    $region13: #{tpu_custom_call.1} parent=1 // pred_fallthru
      _
    // Predicated region
    $region14: #{tpu_custom_call.1} parent=1 // pred_check
      _
    $region15: #{tpu_custom_call.1} parent=1 // pred_check_branch
      %53 = sbr.rel (0) target = $region17
    $region16: #{tpu_custom_call.1} parent=1 // pred_region
      %55 = dma.done [#allocation7], 256
    $region17: #{tpu_custom_call.1} parent=1 // pred_fallthru
      _
    %s56 = sadd.s32 0, 0
    %p57 = scmp.lt.s32.totalorder %s56, 0
    %s58 = scalar_select %p57, %s56, 0
    %s59 = smul.u32 2, %s58
    %s60 = sadd.s32 0, 0
    %p61 = scmp.lt.s32.totalorder %s60, 0
    %s62 = scalar_select %p61, %s60, 0
    %s63 = smul.u32 2, %s62
    %p64 = scmp.eq.s32.totalorder 0, 0
    // Predicated region
    $region18: #{tpu_custom_call.1} parent=1 // pred_check
      %p65 = pneg %p64
    $region19: #{tpu_custom_call.1} parent=1 // pred_check_branch
      %67 = sbr.rel (%p65) target = $region21
    $region20: #{tpu_custom_call.1} parent=1 // pred_region
      %68 = vst [vmem:[#allocation2] sm:$0xff] 0.0
      %69 = vst [vmem:[#allocation2 + $0x8] sm:$0xff] 0.0
    $region21: #{tpu_custom_call.1} parent=1 // pred_fallthru
      _
    %v70 = vld [vmem:[#allocation3] sm:$0xff]
    %v71 = vld [vmem:[#allocation3 + $0x8] sm:$0xff]
    %v72 = vld [vmem:[#allocation6] sm:$0xff]
    %v73 = vld [vmem:[#allocation6 + $0x8] sm:$0xff]
    %v74 = vand.u32 2147483647, %v70
    %v75 = vand.u32 2147483647, %v71
    %v76 = vsub.f32 0.0, %v74
    %v77 = vsub.f32 0.0, %v75
    %v78 = vmul.f32 %v76, 1.442695
    %v79 = vpow.pop %v78
    %v80 = vmul.f32 %v77, 1.442695
    %v81 = vpow.pop %v80
    %v82 = vadd.f32 %v79, 1.0
    %v83 = vlog2.pop %v82
    %v84 = vmul.f32 %v83, 0.6931472
    %v85 = vmul.f32 -0.5, %v79
    %v86 = vadd.f32 %v85, 1.0
    %v87 = vmul.f32 %v86, %v79
    %v88 = vand.u32 2147483647, %v79
    %vm89 = vcmp.lt.f32.partialorder %v88, 0.0004427343
    %v90 = vsel %vm89, %v87, %v84
    %v91 = vadd.f32 %v81, 1.0
    %v92 = vlog2.pop %v91
    %v93 = vmul.f32 %v92, 0.6931472
    %v94 = vmul.f32 -0.5, %v81
    %v95 = vadd.f32 %v94, 1.0
    %v96 = vmul.f32 %v95, %v81
    %v97 = vand.u32 2147483647, %v81
    %vm98 = vcmp.lt.f32.partialorder %v97, 0.0004427343
    %v99 = vsel %vm98, %v96, %v93
    %v100 = vmax.f32 %v70, 0.0
    %v101 = vmax.f32 %v71, 0.0
    %v102 = vadd.f32 %v100, %v90
    %v103 = vadd.f32 %v101, %v99
    %v104 = vsub.f32 0.0, %v70
    %v105 = vsub.f32 0.0, %v71
    %v106 = vmax.f32 %v104, 0.0
    %v107 = vmax.f32 %v105, 0.0
    %v108 = vadd.f32 %v106, %v90
    %v109 = vadd.f32 %v107, %v99
    %v110 = vmul.f32 %v72, %v108
    %v111 = vmul.f32 %v73, %v109
    %v112 = vsub.f32 1.0, %v72
    %v113 = vsub.f32 1.0, %v73
    %v114 = vmul.f32 %v112, %v102
    %v115 = vmul.f32 %v113, %v103
    %v116 = vadd.f32 %v110, %v114
    %v117 = vadd.f32 %v111, %v115
    %v118 = vsub.f32 %v72, 0.5
    %v119 = vsub.f32 %v73, 0.5
    %v120 = vmul.f32 %v118, %v118
    %v121 = vmul.f32 %v119, %v119
    %v122 = vmul.f32 %v120, 4.0
    %v123 = vmul.f32 %v121, 4.0
    %v124 = vmul.f32 %v116, %v122
    %v125 = vmul.f32 %v117, %v123
    %v126 = vld [vmem:[#allocation2] sm:$0xff]
    %v127 = vld [vmem:[#allocation2 + $0x8] sm:$0xff]
    %v128 = vadd.f32 %v126, %v124
    %v129 = vadd.f32 %v127, %v125
    %130 = vst [vmem:[#allocation2] sm:$0xff] %v128
    %131 = vst [vmem:[#allocation2 + $0x8] sm:$0xff] %v129
    // Predicated region
    $region22: #{tpu_custom_call.1} parent=1 // pred_check
      %p132 = pneg %p64
    $region23: #{tpu_custom_call.1} parent=1 // pred_check_branch
      %134 = sbr.rel (%p132) target = $region25
    $region24: #{tpu_custom_call.1} parent=1 // pred_region
      %v135 = vld [vmem:[#allocation2] sm:$0xff]
      %v136 = vld [vmem:[#allocation2 + $0x8] sm:$0xff]
      %v137 = vadd.f32 %v135, %v136
      %138 = vst [vmem:[#allocation8] sm:$0xff] %v137
    $region25: #{tpu_custom_call.1} parent=1 // pred_fallthru
      _
    // Predicated region
    $region26: #{tpu_custom_call.1} parent=1 // pred_check
      _
    $region27: #{tpu_custom_call.1} parent=1 // pred_check_branch
      %140 = sbr.rel (0) target = $region29
    $region28: #{tpu_custom_call.1} parent=1 // pred_region
      %142 = vsyncadd [#allocation5], 0
      %s144 = sshll.u32 [#allocation8], 4
      %s145 = int_to_ptr.vmem [resolvable:$true] %s144
      %s146 = sshll.u32 %s2, 4
      %s147 = int_to_ptr.hbm [resolvable:$true] %s146
      %149 = dma.vmem_to_hbm [thread:$0]  %s145, 128, %s147, [#allocation5]
    $region29: #{tpu_custom_call.1} parent=1 // pred_fallthru
      _
    // Predicated region
    $region30: #{tpu_custom_call.1} parent=1 // pred_check
      _
    $region31: #{tpu_custom_call.1} parent=1 // pred_check_branch
      %151 = sbr.rel (0) target = $region33
    $region32: #{tpu_custom_call.1} parent=1 // pred_region
      %153 = dma.done [#allocation5], 128
    $region33: #{tpu_custom_call.1} parent=1 // pred_fallthru
      _
    %154 = vsyncpa [#allocation4], 1
    %155 = vsyncpa [#allocation7], 1
    %156 = vsyncpa [#allocation5], 1

</llo_original>
